<compile_context>
chip_gen: v7x
topology: tpu7x:2x2x1
jax: 0.10.0
libtpu: 0.0.40
codegen_flags: <defaults>
</compile_context>

<pallas_src>
import jax
import jax.numpy as jnp
from jax.experimental import pallas as pl
from jax.experimental.pallas import tpu as pltpu


# --------------------------------------------------------------------------- #
# Kernel
# --------------------------------------------------------------------------- #
def _make_cfg_kernel(S, ts):
    """Build the kernel body; S (true spatial size) and ts (spatial tile) are static."""
    mask_spatial = (S % ts) != 0   # only emit the lane mask when the tail is ragged

    def kernel(x_ref, w1_ref, t1_ref, w2_ref, b2_ref, o_ref, acc_ref):
        # Grid = (batch tiles ["parallel"], spatial tiles ["arbitrary" reduction]).
        #   x_ref  : (tb, C, ts)    streamed input chunk (f32 or bf16)
        #   w1_ref : (C, hidden)    folded fc1 weight  (BN1 scale, 1/(H*W) folded in)
        #   t1_ref : (1, hidden)    folded fc1 "bias"  (BN1 shift)
        #   w2_ref : (hidden, out)  folded fc2 weight  (BN2 scale, 1/T folded in)
        #   b2_ref : (1, out)       folded fc2 bias    (conv bias, BN2 shift, 1/T)
        #   o_ref  : (tb, out)      softmax output (f32)
        #   acc_ref: (tb, C) f32    pooled-sum accumulator (VMEM scratch)
        k = pl.program_id(1)

        @pl.when(k == 0)
        def _init():
            acc_ref[...] = jnp.zeros_like(acc_ref)

        # Global average pooling: accumulate per-(batch, channel) sums over this
        # spatial chunk (the 1/(H*W) divisor is folded into w1).
        xf = x_ref[...].astype(jnp.float32)
        if mask_spatial:
            # Ragged last spatial tile: zero the out-of-range lanes in-register
            # instead of padding x in HBM (saves a full extra pass over x).
            lane = jax.lax.broadcasted_iota(jnp.int32, xf.shape, 2)
            xf = jnp.where(k * ts + lane < S, xf, 0.0)
        acc_ref[...] += jnp.sum(xf, axis=-1)

        @pl.when(k == pl.num_programs(1) - 1)
        def _tail():
            pooled = acc_ref[...]                                       # (tb, C)

            # fc1_1 (1x1 conv, no bias) + folded bn1_1 + relu
            h = jnp.dot(pooled, w1_ref[...],
                        preferred_element_type=jnp.float32) + t1_ref[...]
            h = jnp.maximum(h, 0.0)

            # fc1_2_new (1x1 conv, bias) + folded bn1_2_new + folded 1/T
            z = jnp.dot(h, w2_ref[...],
                        preferred_element_type=jnp.float32) + b2_ref[...]

            # numerically stable softmax over the K*C axis
            z = z - jnp.max(z, axis=-1, keepdims=True)
            e = jnp.exp(z)
            denom = jnp.sum(e, axis=-1, keepdims=True)
            o_ref[...] = (e * pl.reciprocal(denom, approx=False)).astype(o_ref.dtype)

    return kernel


# --------------------------------------------------------------------------- #
# Tiling / VMEM budgeting
# --------------------------------------------------------------------------- #
def _round_up(x, m):
    return (x + m - 1) // m * m


# Per x buffer (doubled for pipelining).  16 MiB amortizes the ~0.35us grid-step
# overhead to a few % on v7x (3.2 TB/s HBM) while 2x16 MiB + params stays well
# inside v7x's 64 MiB physical VMEM; it is also comfortably safe on v5e/v6e.
_TARGET_X_TILE_BYTES = 16 * 1024 * 1024


def _vmem_capacity_bytes():
    try:
        return int(pltpu.get_tpu_info().vmem_capacity_bytes)
    except Exception:
        return 64 << 20    # conservative fallback = v7x physical VMEM


def _choose_tiles(B, C, S, itemsize, budget):
    """Pick (batch_tile, spatial_tile).  Prefers full-S rows (no HBM padding)."""
    sub = max(8, 32 // itemsize)               # sublane packing: 8 f32, 16 bf16
    c_rows = _round_up(C, sub)
    lane_S = _round_up(S, 128)                 # VMEM lane padding of a full row

    # --- preferred: full-S rows -> spatial grid axis of length 1, no masking ---
    row_bytes = c_rows * lane_S * itemsize
    max_tb = budget // row_bytes
    if max_tb >= B or max_tb >= 8:
        if max_tb >= B:
            tb = B
            # v7x megacore: a single batch tile leaves one TensorCore idle on a
            # purely HBM-bound kernel; split into (at least) two parallel tiles.
            if B >= 16:
                tb = min(B, _round_up(pl.cdiv(B, 2), 8))
        else:
            tb = int((max_tb // 8) * 8)        # output block needs tb % 8 == 0
        return tb, S

    # --- fallback (huge C*S): tile the spatial axis, mask the ragged tail ------
    tb = B if B < 8 else 8
    max_ts = budget // (tb * c_rows * itemsize)
    ts = max(128, (max_ts // 128) * 128)       # lane-dim tiles: multiples of 128
    if ts >= S:
        ts = S
    return tb, ts


# --------------------------------------------------------------------------- #
# Wrapper
# --------------------------------------------------------------------------- #
def cfg_forward(x_nchw, params, T, *, stream_dtype=jnp.bfloat16,
                x_tile_budget_bytes=None):
    """CFG forward.  x_nchw: (B, C, H, W) -> (B, K*C) f32 softmax weights.

    stream_dtype: dtype used to stream x through the kernel (default bf16 to
      halve HBM traffic; accumulation is always f32, so the result differs from
      the f32 reference by ~1e-6..1e-4).  Pass None to stream x in its own
      dtype (bit-exact f32 path).  Best case is for the producer to already
      emit bf16 so the cast below is a no-op.
    """
    B, C, H, W = x_nchw.shape
    S = H * W

    if stream_dtype is not None and x_nchw.dtype != stream_dtype:
        x_nchw = x_nchw.astype(stream_dtype)
    itemsize = x_nchw.dtype.itemsize

    w1 = params["w1"]                              # (C, hidden)
    w2 = params["w2"]                              # (hidden, out)
    hidden = w1.shape[1]
    out_dim = w2.shape[1]

    # ---- constant folding (once, outside the kernel) ------------------------
    inv_T = 1.0 / float(T)
    w1f = ((w1 * params["bn1_scale"]) * (1.0 / S)).astype(jnp.float32)     # (C, hidden)
    t1 = params["bn1_shift"].astype(jnp.float32)                           # (1, hidden)
    w2f = ((w2 * params["bn2_scale"]) * inv_T).astype(jnp.float32)         # (hidden, out)
    bf = ((params["b2"] * params["bn2_scale"] + params["bn2_shift"])
          * inv_T).astype(jnp.float32)                                     # (1, out)

    # ---- tiling (no HBM padding of x) ----------------------------------------
    budget = _TARGET_X_TILE_BYTES if x_tile_budget_bytes is None \
        else int(x_tile_budget_bytes)
    tb, ts = _choose_tiles(B, C, S, itemsize, budget)

    # (B, C, H, W) -> (B, C, H*W): merges the two minor dims, layout-trivial
    # (no data movement, unlike the jnp.pad pre-pass this version removed).
    x3 = x_nchw.reshape(B, C, S)

    grid = (pl.cdiv(B, tb), pl.cdiv(S, ts))

    # ---- VMEM budget / compiler params (padding-aware, capacity-aware) -------
    sub = max(8, 32 // itemsize)
    x_tile_bytes = tb * _round_up(C, sub) * _round_up(ts, 128) * itemsize
    out_tile_bytes = _round_up(tb, 8) * _round_up(out_dim, 128) * 4
    param_bytes = 4 * (_round_up(C, 8) * _round_up(hidden, 128)
                       + 8 * _round_up(hidden, 128)
                       + _round_up(hidden, 8) * _round_up(out_dim, 128)
                       + 8 * _round_up(out_dim, 128))
    acc_bytes = _round_up(tb, 8) * _round_up(C, 128) * 4
    vmem_cap = _vmem_capacity_bytes()
    vmem_limit = (2 * x_tile_bytes + 2 * out_tile_bytes + 2 * param_bytes
                  + acc_bytes + (8 << 20))                 # slack for Mosaic scratch
    vmem_limit = int(min(max(vmem_limit, 16 << 20), vmem_cap - (8 << 20)))

    cost = pl.CostEstimate(
        flops=int(B * C * S + 2 * B * (C * hidden + hidden * out_dim)),
        transcendentals=int(B * out_dim),
        bytes_accessed=int(x3.size * itemsize
                           + 4 * (w1f.size + t1.size + w2f.size + bf.size)
                           + 4 * B * out_dim),
    )

    grid_spec = pltpu.PrefetchScalarGridSpec(
        num_scalar_prefetch=0,
        grid=grid,
        in_specs=[
            pl.BlockSpec((tb, C, ts), lambda i, k: (i, 0, k)),       # streamed x
            # Weights/biases: constant index_maps -> fetched once, VMEM-resident.
            # (pl.Buffered(1) would shave a second buffer; skipped — the params
            #  are tiny and the second buffer is already counted in vmem_limit.)
            pl.BlockSpec((C, hidden), lambda i, k: (0, 0)),
            pl.BlockSpec((1, hidden), lambda i, k: (0, 0)),
            pl.BlockSpec((hidden, out_dim), lambda i, k: (0, 0)),
            pl.BlockSpec((1, out_dim), lambda i, k: (0, 0)),
        ],
        out_specs=pl.BlockSpec((tb, out_dim), lambda i, k: (i, 0)),
        scratch_shapes=[pltpu.VMEM((tb, C), jnp.float32)],
    )

    return pl.pallas_call(
        _make_cfg_kernel(S, ts),
        out_shape=jax.ShapeDtypeStruct((B, out_dim), jnp.float32),
        grid_spec=grid_spec,
        compiler_params=pltpu.CompilerParams(
            dimension_semantics=("parallel", "arbitrary"),
            vmem_limit_bytes=vmem_limit,
        ),
        cost_estimate=cost,
    )(x3, w1f, t1, w2f, bf)


# --------------------------------------------------------------------------- #
# Parameter init (matches CFG._initialize_weights, eval-mode BatchNorm)
# --------------------------------------------------------------------------- #
def init_cfg_params(key, in_planes, K):
    hidden = in_planes if in_planes != 3 else K
    out = K * in_planes
    k1, k2 = jax.random.split(key)

    # kaiming_normal_(fan_in, relu): std = sqrt(2 / fan_in); 1x1 conv -> fan_in = C_in
    w1 = jax.random.normal(k1, (hidden, in_planes), jnp.float32) * jnp.sqrt(2.0 / in_planes)
    w2 = jax.random.normal(k2, (out, hidden), jnp.float32) * jnp.sqrt(2.0 / hidden)
    b2 = jnp.zeros((out,), jnp.float32)

    eps = 1e-5

    def bn_fold(dim):
        gamma = jnp.ones((dim,), jnp.float32)
        beta = jnp.zeros((dim,), jnp.float32)
        rmean = jnp.zeros((dim,), jnp.float32)
        rvar = jnp.ones((dim,), jnp.float32)
        scale = gamma / jnp.sqrt(rvar + eps)
        shift = beta - rmean * scale
        return scale.reshape(1, dim), shift.reshape(1, dim)

    s1, t1 = bn_fold(hidden)
    s2, t2 = bn_fold(out)

    return {
        "w1": w1.T,                         # (in_planes, hidden) for pooled @ w1
        "bn1_scale": s1, "bn1_shift": t1,
        "w2": w2.T,                         # (hidden, out)
        "b2": b2.reshape(1, out),
        "bn2_scale": s2, "bn2_shift": t2,
    }


def cfg_reference(x_nchw, params, T):
    """Pure-JAX reference (mirrors the PyTorch module, eval-mode BN, f32)."""
    B = x_nchw.shape[0]
    pooled = jnp.mean(x_nchw.astype(jnp.float32), axis=(2, 3))   # (B, C)
    h = pooled @ params["w1"]
    h = h * params["bn1_scale"] + params["bn1_shift"]
    h = jnp.maximum(h, 0.0)
    z = h @ params["w2"] + params["b2"]
    z = z * params["bn2_scale"] + params["bn2_shift"]
    return jax.nn.softmax(z / T, axis=1).reshape(B, -1)


# --------------------------------------------------------------------------- #
# Self-test
# --------------------------------------------------------------------------- #
if __name__ == "__main__":
    key = jax.random.PRNGKey(0)
    kx1, kp1, kx2, kp2, kx3, kp3 = jax.random.split(key, 6)

    # Test 1: toy shape implied by the module; exact f32 streaming; single grid
    # step (full-S rows, whole batch in one tile).
    B, C, H, W, K, T = 2, 4, 16, 16, 4, 30.0
    x = jax.random.normal(kx1, (B, C, H, W), jnp.float32)
    p = init_cfg_params(kp1, C, K)
    out = jax.block_until_ready(cfg_forward(x, p, T, stream_dtype=None))
    ref = cfg_reference(x, p, T)
    assert out.shape == (B, K * C)
    assert jnp.allclose(out, ref, atol=1e-5, rtol=1e-5), \
        float(jnp.max(jnp.abs(out - ref)))
    assert jnp.allclose(jnp.sum(out, axis=1), 1.0, atol=1e-5)

    # Test 2: default bf16 streaming, full-S rows (no spatial tiling / padding),
    # batch split into two "parallel" tiles (v7x megacore) with a ragged last
    # batch tile.  bf16 streaming => documented looser tolerance vs the f32
    # reference (accumulation stays f32; observed error is ~1e-6).
    B2, C2, H2, W2, K2, T2 = 40, 16, 48, 48, 4, 4.0
    x2 = jax.random.normal(kx2, (B2, C2, H2, W2), jnp.float32)
    p2 = init_cfg_params(kp2, C2, K2)
    out2 = jax.block_until_ready(cfg_forward(x2, p2, T2))
    ref2 = cfg_reference(x2, p2, T2)
    assert out2.shape == (B2, K2 * C2)
    assert jnp.allclose(out2, ref2, atol=1e-4), \
        float(jnp.max(jnp.abs(out2 - ref2)))
    assert jnp.allclose(jnp.sum(out2, axis=1), 1.0, atol=1e-4)

    # Test 3: force the spatial-tiling fallback with a tiny tile budget:
    # S=324 with ts=256 -> ragged spatial tail masked in-kernel; B=10 with
    # tb=8 -> ragged batch tile (clipped partial write).  Exact f32 streaming.
    B3, C3, H3, W3, K3, T3 = 10, 4, 18, 18, 4, 6.0
    x3 = jax.random.normal(kx3, (B3, C3, H3, W3), jnp.float32)
    p3 = init_cfg_params(kp3, C3, K3)
    out3 = jax.block_until_ready(
        cfg_forward(x3, p3, T3, stream_dtype=None, x_tile_budget_bytes=64 * 1024))
    ref3 = cfg_reference(x3, p3, T3)
    assert out3.shape == (B3, K3 * C3)
    assert jnp.allclose(out3, ref3, atol=1e-5, rtol=1e-5), \
        float(jnp.max(jnp.abs(out3 - ref3)))
    assert jnp.allclose(jnp.sum(out3, axis=1), 1.0, atol=1e-5)

    print("KERNEL_OK")
</pallas_src>

<mosaic_0001>
module attributes {stable_mosaic.version = 11 : i64} {
  func.func @kernel(%arg0: i32, %arg1: i32, %arg2: memref<2x4x256xf32, #tpu.memory_space<vmem>>, %arg3: memref<4x4xf32, #tpu.memory_space<vmem>>, %arg4: memref<1x4xf32, #tpu.memory_space<vmem>>, %arg5: memref<4x16xf32, #tpu.memory_space<vmem>>, %arg6: memref<1x16xf32, #tpu.memory_space<vmem>>, %arg7: memref<2x16xf32, #tpu.memory_space<vmem>>, %arg8: memref<2x4xf32, #tpu.memory_space<vmem>>) attributes {dimension_semantics = [#tpu.dimension_semantics<parallel>, #tpu.dimension_semantics<arbitrary>], iteration_bounds = array<i64: 1, 1>, scalar_prefetch = 0 : i64, scratch_operands = 1 : i64, tpu.core_type = #tpu.core_type<tc>, window_params = [{transform_indices = @transform_0, window_bounds = array<i64: 2, 4, 256>}, {pipeline_mode = #tpu.pipeline_mode<synchronous>, transform_indices = @transform_1, window_bounds = array<i64: 4, 4>}, {pipeline_mode = #tpu.pipeline_mode<synchronous>, transform_indices = @transform_2, window_bounds = array<i64: 1, 4>}, {pipeline_mode = #tpu.pipeline_mode<synchronous>, transform_indices = @transform_3, window_bounds = array<i64: 4, 16>}, {pipeline_mode = #tpu.pipeline_mode<synchronous>, transform_indices = @transform_4, window_bounds = array<i64: 1, 16>}, {transform_indices = @transform_5, window_bounds = array<i64: 2, 16>}]} {
    %c0_i32 = arith.constant 0 : i32
    %0 = arith.cmpi eq, %arg1, %c0_i32 : i32
    %1 = arith.extui %0 : i1 to i32
    %c0_i32_0 = arith.constant 0 : i32
    %2 = arith.cmpi ne, %1, %c0_i32_0 : i32
    scf.if %2 {
      %cst_9 = arith.constant 0.000000e+00 : f32
      %11 = vector.broadcast %cst_9 : f32 to vector<2x4xf32>
      %c0_10 = arith.constant 0 : index
      %c0_11 = arith.constant 0 : index
      %12 = vector.load %arg8[%c0_10, %c0_11] : memref<2x4xf32, #tpu.memory_space<vmem>>, vector<2x4xf32>
      tpu.vector_store %arg8[%c0_10, %c0_11], %11 {strides = array<i32>} : memref<2x4xf32, #tpu.memory_space<vmem>>, vector<2x4xf32>,
    } else {
    }
    %c0 = arith.constant 0 : index
    %c0_1 = arith.constant 0 : index
    %c0_2 = arith.constant 0 : index
    %3 = vector.load %arg2[%c0, %c0_1, %c0_2] : memref<2x4x256xf32, #tpu.memory_space<vmem>>, vector<2x4x256xf32>
    %c0_3 = arith.constant 0 : index
    %c0_4 = arith.constant 0 : index
    %4 = vector.load %arg8[%c0_3, %c0_4] : memref<2x4xf32, #tpu.memory_space<vmem>>, vector<2x4xf32>
    %cst = arith.constant dense<0.000000e+00> : vector<2x4xf32>
    %5 = vector.multi_reduction <add>, %3, %cst [2] : vector<2x4x256xf32> to vector<2x4xf32>
    %6 = arith.addf %4, %5 : vector<2x4xf32>
    %c0_5 = arith.constant 0 : index
    %c0_6 = arith.constant 0 : index
    %7 = vector.load %arg8[%c0_5, %c0_6] : memref<2x4xf32, #tpu.memory_space<vmem>>, vector<2x4xf32>
    tpu.vector_store %arg8[%c0_5, %c0_6], %6 {strides = array<i32>} : memref<2x4xf32, #tpu.memory_space<vmem>>, vector<2x4xf32>,
    %c0_i32_7 = arith.constant 0 : i32
    %8 = arith.cmpi eq, %arg1, %c0_i32_7 : i32
    %9 = arith.extui %8 : i1 to i32
    %c0_i32_8 = arith.constant 0 : i32
    %10 = arith.cmpi ne, %9, %c0_i32_8 : i32
    scf.if %10 {
      %c0_9 = arith.constant 0 : index
      %c0_10 = arith.constant 0 : index
      %11 = vector.load %arg8[%c0_9, %c0_10] : memref<2x4xf32, #tpu.memory_space<vmem>>, vector<2x4xf32>
      %c0_11 = arith.constant 0 : index
      %c0_12 = arith.constant 0 : index
      %12 = vector.load %arg3[%c0_11, %c0_12] : memref<4x4xf32, #tpu.memory_space<vmem>>, vector<4x4xf32>
      %cst_13 = arith.constant dense<0.000000e+00> : vector<2x4xf32>
      %13 = tpu.matmul %11, %12, %cst_13 {dimension_numbers = #tpu.dot_dimension_numbers<[1], [0], [0], [1], [0, 0, 1, 1], [], []>} : vector<2x4xf32>, vector<4x4xf32>, vector<2x4xf32> -> vector<2x4xf32>
      %c0_14 = arith.constant 0 : index
      %c0_15 = arith.constant 0 : index
      %14 = vector.load %arg4[%c0_14, %c0_15] : memref<1x4xf32, #tpu.memory_space<vmem>>, vector<1x4xf32>
      %15 = vector.broadcast %14 : vector<1x4xf32> to vector<2x4xf32>
      %16 = arith.addf %13, %15 : vector<2x4xf32>
      %cst_16 = arith.constant 0.000000e+00 : f32
      %17 = vector.broadcast %cst_16 : f32 to vector<2x4xf32>
      %18 = arith.maximumf %16, %17 : vector<2x4xf32>
      %c0_17 = arith.constant 0 : index
      %c0_18 = arith.constant 0 : index
      %19 = vector.load %arg5[%c0_17, %c0_18] : memref<4x16xf32, #tpu.memory_space<vmem>>, vector<4x16xf32>
      %cst_19 = arith.constant dense<0.000000e+00> : vector<2x16xf32>
      %20 = tpu.matmul %18, %19, %cst_19 {dimension_numbers = #tpu.dot_dimension_numbers<[1], [0], [0], [1], [0, 0, 1, 1], [], []>} : vector<2x4xf32>, vector<4x16xf32>, vector<2x16xf32> -> vector<2x16xf32>
      %c0_20 = arith.constant 0 : index
      %c0_21 = arith.constant 0 : index
      %21 = vector.load %arg6[%c0_20, %c0_21] : memref<1x16xf32, #tpu.memory_space<vmem>>, vector<1x16xf32>
      %22 = vector.broadcast %21 : vector<1x16xf32> to vector<2x16xf32>
      %23 = arith.addf %20, %22 : vector<2x16xf32>
      %cst_22 = arith.constant dense<0xFF800000> : vector<2xf32>
      %24 = vector.multi_reduction <maximumf>, %23, %cst_22 [1] : vector<2x16xf32> to vector<2xf32>
      %25 = vector.shape_cast %24 : vector<2xf32> to vector<2x1xf32>
      %26 = vector.broadcast %25 : vector<2x1xf32> to vector<2x16xf32>
      %27 = arith.subf %23, %26 : vector<2x16xf32>
      %28 = math.exp %27 : vector<2x16xf32>
      %cst_23 = arith.constant dense<0.000000e+00> : vector<2xf32>
      %29 = vector.multi_reduction <add>, %28, %cst_23 [1] : vector<2x16xf32> to vector<2xf32>
      %30 = vector.shape_cast %29 : vector<2xf32> to vector<2x1xf32>
      %31 = tpu.reciprocal %30 : vector<2x1xf32> -> vector<2x1xf32>
      %32 = vector.broadcast %31 : vector<2x1xf32> to vector<2x16xf32>
      %33 = arith.mulf %28, %32 : vector<2x16xf32>
      %c0_24 = arith.constant 0 : index
      %c0_25 = arith.constant 0 : index
      %34 = vector.load %arg7[%c0_24, %c0_25] : memref<2x16xf32, #tpu.memory_space<vmem>>, vector<2x16xf32>
      tpu.vector_store %arg7[%c0_24, %c0_25], %33 {strides = array<i32>} : memref<2x16xf32, #tpu.memory_space<vmem>>, vector<2x16xf32>,
    } else {
    }
    return
  }
  func.func @transform_0(%arg0: i32, %arg1: i32) -> (i32, i32, i32) {
    %c0_i32 = arith.constant 0 : i32
    %c0_i32_0 = arith.constant 0 : i32
    return %arg0, %c0_i32, %arg1 : i32, i32, i32
  }
  func.func @transform_1(%arg0: i32, %arg1: i32) -> (i32, i32) {
    %c0_i32 = arith.constant 0 : i32
    %c0_i32_0 = arith.constant 0 : i32
    %c0_i32_1 = arith.constant 0 : i32
    return %c0_i32, %c0_i32_0 : i32, i32
  }
  func.func @transform_2(%arg0: i32, %arg1: i32) -> (i32, i32) {
    %c0_i32 = arith.constant 0 : i32
    %c0_i32_0 = arith.constant 0 : i32
    %c0_i32_1 = arith.constant 0 : i32
    return %c0_i32, %c0_i32_0 : i32, i32
  }
  func.func @transform_3(%arg0: i32, %arg1: i32) -> (i32, i32) {
    %c0_i32 = arith.constant 0 : i32
    %c0_i32_0 = arith.constant 0 : i32
    %c0_i32_1 = arith.constant 0 : i32
    return %c0_i32, %c0_i32_0 : i32, i32
  }
  func.func @transform_4(%arg0: i32, %arg1: i32) -> (i32, i32) {
    %c0_i32 = arith.constant 0 : i32
    %c0_i32_0 = arith.constant 0 : i32
    %c0_i32_1 = arith.constant 0 : i32
    return %c0_i32, %c0_i32_0 : i32, i32
  }
  func.func @transform_5(%arg0: i32, %arg1: i32) -> (i32, i32) {
    %c0_i32 = arith.constant 0 : i32
    %c0_i32_0 = arith.constant 0 : i32
    return %arg0, %c0_i32 : i32, i32
  }
}

</mosaic_0001>

<llo_original>
// kernel: tpu_custom_call.1
$region0: #{tpu_custom_call.1}
  #allocation0 [shape = 'u32[]', space=smem, size = 0x4, offset = 0x4, fixed_abs, tag = 'smem constant byte address 0x4 - core index']
  #allocation1 [shape = 'u32[144,128]{1,0:T(1,128)}', space=vmem, size = 0x12000, scoped, tag = 'internal scratch']
  #allocation2 [shape = 'f32[2,4]{1,0:T(2,128)}', space=vmem, size = 0x400, scoped, tag = 'scratch operand']
  %s0 = inlined_call_operand.hbm [shape: f32[2,4,256], index: 0, kind: input, shape index: {}]
  %s1 = inlined_call_operand.hbm [shape: f32[4,4], index: 1, kind: input, shape index: {}]
  %s2 = inlined_call_operand.vmem [shape: f32[1,4], index: 2, kind: input, shape index: {}]
  %s3 = inlined_call_operand.vmem [shape: f32[4,16], index: 3, kind: input, shape index: {}]
  %s4 = inlined_call_operand.vmem [shape: f32[1,16], index: 4, kind: input, shape index: {}]
  %s5 = inlined_call_operand.hbm [shape: f32[2,16], index: 5, kind: output, shape index: {}]
  %s6 = sld [smem:[#allocation0]]
  $region46: #{tpu_custom_call.1} parent=0
    _
  %s8 = ssub.s32 1, %s6
  %s9 = scalar_select 0, %s8, %s6
  $region1: #{tpu_custom_call.1} parent=0
    #allocation3 [shape = 'u8[8192]{0}', space=vmem, size = 0x2000, scoped, tag = 'input window, operand 0, single buffered']
    #allocation4 [shape = 's32[1]{0}', space=sflag, size = 0x4, scoped, tag = 'scoped memory for tpu_custom_call.1']
    #allocation5 [shape = 's32[1]{0}', space=sflag, size = 0x4, scoped, tag = 'scoped memory for tpu_custom_call.1']
    #allocation6 [shape = 'u8[2048]{0}', space=vmem, size = 0x800, scoped, tag = 'input window, operand 1, single buffered']
    #allocation7 [shape = 's32[1]{0}', space=sflag, size = 0x4, scoped, tag = 'scoped memory for tpu_custom_call.1']
    #allocation8 [shape = 'u8[1024]{0}', space=vmem, size = 0x400, scoped, tag = 'output window, operand 0, single buffered']
    %10 = vsyncpa [#allocation4], 0
    %11 = vsyncpa [#allocation7], 0
    %12 = vsyncpa [#allocation5], 0
    // Predicated region
    $region2: #{tpu_custom_call.1} parent=1 // pred_check
      _
    $region3: #{tpu_custom_call.1} parent=1 // pred_check_branch
      %14 = sbr.rel (0) target = $region5
    $region4: #{tpu_custom_call.1} parent=1 // pred_region
      %s16 = ssub.s32 256, 256
      %17 = vsyncadd [#allocation4], %s16
      %s18 = sshll.u32 [#allocation3], 4
      %s19 = int_to_ptr.vmem [resolvable:$true] %s18
      %24 = dma.hbm_to_vmem [thread:$0]  %s0, 256, %s19, [#allocation4], 128, 128, 8
    $region5: #{tpu_custom_call.1} parent=1 // pred_fallthru
      _
    // Predicated region
    $region6: #{tpu_custom_call.1} parent=1 // pred_check
      _
    $region7: #{tpu_custom_call.1} parent=1 // pred_check_branch
      %26 = sbr.rel (0) target = $region9
    $region8: #{tpu_custom_call.1} parent=1 // pred_region
      %s28 = ssub.s32 64, 64
      %29 = vsyncadd [#allocation7], %s28
      %s31 = sshll.u32 [#allocation6], 4
      %s32 = int_to_ptr.vmem [resolvable:$true] %s31
      %34 = dma.hbm_to_vmem [thread:$0]  %s1, 64, %s32, [#allocation7]
    $region9: #{tpu_custom_call.1} parent=1 // pred_fallthru
      _
    // Predicated region
    $region10: #{tpu_custom_call.1} parent=1 // pred_check
      _
    $region11: #{tpu_custom_call.1} parent=1 // pred_check_branch
      %36 = sbr.rel (0) target = $region13
    $region12: #{tpu_custom_call.1} parent=1 // pred_region
      _
    $region13: #{tpu_custom_call.1} parent=1 // pred_fallthru
      _
    // Predicated region
    $region14: #{tpu_custom_call.1} parent=1 // pred_check
      _
    $region15: #{tpu_custom_call.1} parent=1 // pred_check_branch
      %38 = sbr.rel (0) target = $region17
    $region16: #{tpu_custom_call.1} parent=1 // pred_region
      _
    $region17: #{tpu_custom_call.1} parent=1 // pred_fallthru
      _
    // Predicated region
    $region18: #{tpu_custom_call.1} parent=1 // pred_check
      _
    $region19: #{tpu_custom_call.1} parent=1 // pred_check_branch
      %40 = sbr.rel (0) target = $region21
    $region20: #{tpu_custom_call.1} parent=1 // pred_region
      _
    $region21: #{tpu_custom_call.1} parent=1 // pred_fallthru
      _
    // Predicated region
    $region22: #{tpu_custom_call.1} parent=1 // pred_check
      _
    $region23: #{tpu_custom_call.1} parent=1 // pred_check_branch
      %42 = sbr.rel (0) target = $region25
    $region24: #{tpu_custom_call.1} parent=1 // pred_region
      %43 = dma.done [#allocation4], 256
    $region25: #{tpu_custom_call.1} parent=1 // pred_fallthru
      _
    // Predicated region
    $region26: #{tpu_custom_call.1} parent=1 // pred_check
      _
    $region27: #{tpu_custom_call.1} parent=1 // pred_check_branch
      %45 = sbr.rel (0) target = $region29
    $region28: #{tpu_custom_call.1} parent=1 // pred_region
      %46 = dma.done [#allocation7], 64
    $region29: #{tpu_custom_call.1} parent=1 // pred_fallthru
      _
    %p47 = scmp.eq.s32.totalorder 0, 0
    // Predicated region
    $region30: #{tpu_custom_call.1} parent=1 // pred_check
      %p48 = pneg %p47
    $region31: #{tpu_custom_call.1} parent=1 // pred_check_branch
      %50 = sbr.rel (%p48) target = $region33
    $region32: #{tpu_custom_call.1} parent=1 // pred_region
      %vm51 = vcmask 25600
      %52 = vst.msk [vmem:[#allocation2] sm:$0x3] %vm51, 0.0
    $region33: #{tpu_custom_call.1} parent=1 // pred_fallthru
      _
    %v53 = vld [vmem:[#allocation3] sm:$0xff]
    %v54 = vld [vmem:[#allocation3 + $0x8] sm:$0xff]
    %v55 = vld [vmem:[#allocation2] sm:$0x3]
    %v58 = vcombine.high %v53, %v53
    %v59 = vcombine.high %v54, %v54
    %vm62 = vcmask 1043456
    %v63 = vsel %vm62, %v53, 0.0
    %v64 = vsel %vm62, %v58, 0.0
    %v65 = vadd.f32 %v63, %v64
    %66 = vadd.xlane.f32.xlu0 %v65
    %v67 = vpop.xlane.xlu0 %66
    %v68 = vsel %vm62, %v54, 0.0
    %v69 = vsel %vm62, %v59, 0.0
    %v70 = vadd.f32 %v68, %v69
    %71 = vadd.xlane.f32.xlu0 %v70
    %v72 = vpop.xlane.xlu0 %71
    %v75 = vlaneseq
    %v76 = vand.u32 %v75, 127
    %v77 = vlaneseq
    %v78 = vshrl.u32 %v77, 7
    %v79 = vsub.s32 %v76, %v78
    %v80 = vrot.slane %v67, %v79
    %v81 = vlaneseq
    %v82 = vshrl.u32 %v81, 7
    %v83 = vsub.s32 %v76, %v82
    %v84 = vrot.slane %v72, %v83
    %vm85 = vcmask 1041409
    %v86 = vsel %vm85, %v84, %v80
    %v88 = vadd.f32 %v55, %v86
    %vm89 = vcmask 25600
    %90 = vst.msk [vmem:[#allocation2] sm:$0x3] %vm89, %v88
    // Predicated region
    $region34: #{tpu_custom_call.1} parent=1 // pred_check
      %p91 = pneg %p47
    $region35: #{tpu_custom_call.1} parent=1 // pred_check_branch
      %93 = sbr.rel (%p91) target = $region37
    $region36: #{tpu_custom_call.1} parent=1 // pred_region
      %v94 = vld [vmem:[#allocation2] sm:$0x3]
      %v95 = vld [vmem:[#allocation6] sm:$0xf]
      %v96 = vld [vmem:[%s2] sm:$0x1]
      %v98 = vlaneseq
      %v99 = vshrl.u32 %v98, 7
      %v100 = vsub.s32 0, %v99
      %v101 = vrot.slane %v96, %v100
      %vm103 = vcmask 31744
      %v105 = vsel %vm103, %v94, 0
      %v108 = vsel %vm62, %v95, 0
      %110 = vmatprep.subr.mxu0 0.0
      %111 = vmatpush1.msra.mxu0 %v108
      %112 = vmatprep.subr.mxu0 0.0
      %113 = vmatpush1.msra.mxu0 0.0
      %114 = vmatprep.subr.mxu0 0.0
      %115 = vmatpush1.msra.mxu0 0.0
      %116 = vmatprep.subr.mxu0 0.0
      %117 = vmatpush1.msra.mxu0 0.0
      %118 = vmatprep.subr.mxu0 0.0
      %119 = vmatpush1.msra.mxu0 0.0
      %120 = vmatprep.subr.mxu0 0.0
      %121 = vmatpush1.msra.mxu0 0.0
      %122 = vmatprep.subr.mxu0 0.0
      %123 = vmatpush1.msra.mxu0 0.0
      %124 = vmatprep.subr.mxu0 0.0
      %125 = vmatpush1.msra.mxu0 0.0
      %126 = vmatprep.subr.mxu0 0.0
      %127 = vmatpush1.msra.mxu0 0.0
      %128 = vmatprep.subr.mxu0 0.0
      %129 = vmatpush1.msra.mxu0 0.0
      %130 = vmatprep.subr.mxu0 0.0
      %131 = vmatpush1.msra.mxu0 0.0
      %132 = vmatprep.subr.mxu0 0.0
      %133 = vmatpush1.msra.mxu0 0.0
      %134 = vmatprep.subr.mxu0 0.0
      %135 = vmatpush1.msra.mxu0 0.0
      %136 = vmatprep.subr.mxu0 0.0
      %137 = vmatpush1.msra.mxu0 0.0
      %138 = vmatprep.subr.mxu0 0.0
      %139 = vmatpush1.msra.mxu0 0.0
      %140 = vmatprep.subr.mxu0 0.0
      %141 = vmatpush1.msra.mxu0 0.0
      %142 = vmatprep.subr.mxu0 0.0
      %143 = vmatpush1.msra.mxu0 0.0
      %144 = vmatprep.subr.mxu0 0.0
      %145 = vmatpush1.msra.mxu0 0.0
      %146 = vmatprep.subr.mxu0 0.0
      %147 = vmatpush1.msra.mxu0 0.0
      %148 = vmatprep.subr.mxu0 0.0
      %149 = vmatpush1.msra.mxu0 0.0
      %150 = vmatprep.subr.mxu0 0.0
      %151 = vmatpush1.msra.mxu0 0.0
      %152 = vmatprep.subr.mxu0 0.0
      %153 = vmatpush1.msra.mxu0 0.0
      %154 = vmatprep.subr.mxu0 0.0
      %155 = vmatpush1.msra.mxu0 0.0
      %156 = vmatprep.subr.mxu0 0.0
      %157 = vmatpush1.msra.mxu0 0.0
      %158 = vmatprep.subr.mxu0 0.0
      %159 = vmatpush1.msra.mxu0 0.0
      %160 = vmatprep.subr.mxu0 0.0
      %161 = vmatpush1.msra.mxu0 0.0
      %162 = vmatprep.subr.mxu0 0.0
      %163 = vmatpush1.msra.mxu0 0.0
      %164 = vmatprep.subr.mxu0 0.0
      %165 = vmatpush1.msra.mxu0 0.0
      %166 = vmatprep.subr.mxu0 0.0
      %167 = vmatpush1.msra.mxu0 0.0
      %168 = vmatprep.subr.mxu0 0.0
      %169 = vmatpush1.msra.mxu0 0.0
      %170 = vmatprep.subr.mxu0 0.0
      %171 = vmatpush1.msra.mxu0 0.0
      %172 = vmatprep.subr.mxu0 0.0
      %173 = vmatpush1.msra.mxu0 0.0
      %174 = vmatprep.mubr.f32.mxu0 0.0
      %175 = vmatmul.mubr.f32.gmra.mrb[0].mxu0 %v105
      %v176 = vpop.f32.mrb[0].mxu0
      %v177 = vadd.f32 %v101, %v176
      %v178 = vpop.f32.mrb[0].mxu0
      %179 = vdwg.mxu0
      %v180 = vmax.f32 %v177, 0.0
      %v181 = vld [vmem:[%s3] sm:$0xf]
      %v182 = vld [vmem:[%s4] sm:$0x1]
      %v184 = vlaneseq
      %v185 = vshrl.u32 %v184, 7
      %v186 = vsub.s32 0, %v185
      %v187 = vrot.slane %v182, %v186
      %v190 = vsel %vm103, %v180, 0
      %v193 = vsel %vm62, %v181, 0
      %195 = vmatprep.subr.mxu0 0.0
      %196 = vmatpush1.msra.mxu0 %v193
      %197 = vmatprep.subr.mxu0 0.0
      %198 = vmatpush1.msra.mxu0 0.0
      %199 = vmatprep.subr.mxu0 0.0
      %200 = vmatpush1.msra.mxu0 0.0
      %201 = vmatprep.subr.mxu0 0.0
      %202 = vmatpush1.msra.mxu0 0.0
      %203 = vmatprep.subr.mxu0 0.0
      %204 = vmatpush1.msra.mxu0 0.0
      %205 = vmatprep.subr.mxu0 0.0
      %206 = vmatpush1.msra.mxu0 0.0
      %207 = vmatprep.subr.mxu0 0.0
      %208 = vmatpush1.msra.mxu0 0.0
      %209 = vmatprep.subr.mxu0 0.0
      %210 = vmatpush1.msra.mxu0 0.0
      %211 = vmatprep.subr.mxu0 0.0
      %212 = vmatpush1.msra.mxu0 0.0
      %213 = vmatprep.subr.mxu0 0.0
      %214 = vmatpush1.msra.mxu0 0.0
      %215 = vmatprep.subr.mxu0 0.0
      %216 = vmatpush1.msra.mxu0 0.0
      %217 = vmatprep.subr.mxu0 0.0
      %218 = vmatpush1.msra.mxu0 0.0
      %219 = vmatprep.subr.mxu0 0.0
      %220 = vmatpush1.msra.mxu0 0.0
      %221 = vmatprep.subr.mxu0 0.0
      %222 = vmatpush1.msra.mxu0 0.0
      %223 = vmatprep.subr.mxu0 0.0
      %224 = vmatpush1.msra.mxu0 0.0
      %225 = vmatprep.subr.mxu0 0.0
      %226 = vmatpush1.msra.mxu0 0.0
      %227 = vmatprep.subr.mxu0 0.0
      %228 = vmatpush1.msra.mxu0 0.0
      %229 = vmatprep.subr.mxu0 0.0
      %230 = vmatpush1.msra.mxu0 0.0
      %231 = vmatprep.subr.mxu0 0.0
      %232 = vmatpush1.msra.mxu0 0.0
      %233 = vmatprep.subr.mxu0 0.0
      %234 = vmatpush1.msra.mxu0 0.0
      %235 = vmatprep.subr.mxu0 0.0
      %236 = vmatpush1.msra.mxu0 0.0
      %237 = vmatprep.subr.mxu0 0.0
      %238 = vmatpush1.msra.mxu0 0.0
      %239 = vmatprep.subr.mxu0 0.0
      %240 = vmatpush1.msra.mxu0 0.0
      %241 = vmatprep.subr.mxu0 0.0
      %242 = vmatpush1.msra.mxu0 0.0
      %243 = vmatprep.subr.mxu0 0.0
      %244 = vmatpush1.msra.mxu0 0.0
      %245 = vmatprep.subr.mxu0 0.0
      %246 = vmatpush1.msra.mxu0 0.0
      %247 = vmatprep.subr.mxu0 0.0
      %248 = vmatpush1.msra.mxu0 0.0
      %249 = vmatprep.subr.mxu0 0.0
      %250 = vmatpush1.msra.mxu0 0.0
      %251 = vmatprep.subr.mxu0 0.0
      %252 = vmatpush1.msra.mxu0 0.0
      %253 = vmatprep.subr.mxu0 0.0
      %254 = vmatpush1.msra.mxu0 0.0
      %255 = vmatprep.subr.mxu0 0.0
      %256 = vmatpush1.msra.mxu0 0.0
      %257 = vmatprep.subr.mxu0 0.0
      %258 = vmatpush1.msra.mxu0 0.0
      %259 = vmatprep.mubr.f32.mxu0 0.0
      %260 = vmatmul.mubr.f32.gmra.mrb[0].mxu0 %v190
      %v261 = vpop.f32.mrb[0].mxu0
      %v262 = vadd.f32 %v187, %v261
      %v263 = vpop.f32.mrb[0].mxu0
      %264 = vdwg.mxu0
      %vm265 = vcmask 123904
      %v266 = vsel %vm265, %v262, -inf
      %267 = vmax.xlane.f32.xlu0 %v266
      %v268 = vpop.xlane.xlu0 %267
      %v269 = vsub.f32 %v262, %v268
      %v270 = vmul.f32 %v269, 1.442695
      %v271 = vpow.pop %v270
      %v272 = vsel %vm265, %v271, 0.0
      %273 = vadd.xlane.f32.xlu0 %v272
      %v274 = vpop.xlane.xlu0 %273
      %v275 = vrcp.pop %v274
      %v276 = vmul.f32 %v271, %v275
      %277 = vst.msk [vmem:[#allocation8] sm:$0x3] %vm265, %v276
    $region37: #{tpu_custom_call.1} parent=1 // pred_fallthru
      _
    // Predicated region
    $region38: #{tpu_custom_call.1} parent=1 // pred_check
      _
    $region39: #{tpu_custom_call.1} parent=1 // pred_check_branch
      %279 = sbr.rel (0) target = $region41
    $region40: #{tpu_custom_call.1} parent=1 // pred_region
      %s281 = ssub.s32 32, 32
      %282 = vsyncadd [#allocation5], %s281
      %s284 = sshll.u32 [#allocation8], 4
      %s285 = int_to_ptr.vmem [resolvable:$true] %s284
      %287 = dma.vmem_to_hbm [thread:$0]  %s285, 32, %s5, [#allocation5]
    $region41: #{tpu_custom_call.1} parent=1 // pred_fallthru
      _
    // Predicated region
    $region42: #{tpu_custom_call.1} parent=1 // pred_check
      _
    $region43: #{tpu_custom_call.1} parent=1 // pred_check_branch
      %289 = sbr.rel (0) target = $region45
    $region44: #{tpu_custom_call.1} parent=1 // pred_region
      %290 = dma.done [#allocation5], 32
    $region45: #{tpu_custom_call.1} parent=1 // pred_fallthru
      _
    %291 = vsyncpa [#allocation4], 1
    %292 = vsyncpa [#allocation7], 1
    %293 = vsyncpa [#allocation5], 1

</llo_original>
